<compile_context>
chip_gen: v6e
topology: v6e:2x2x1
jax: 0.10.0
libtpu: 0.0.40
codegen_flags: <defaults>
</compile_context>

<pallas_src>
import jax
import jax.numpy as jnp
from jax.experimental import pallas as pl
from jax.experimental.pallas import tpu as pltpu


def _round_up(x, m):
    return (x + m - 1) // m * m


def _gru_kernel(x_ref, h_ref, wih_ref, whh_ref, b_ref, o_ref, acc_ref):
    k = pl.program_id(2)

    @pl.when(k == 0)
    def _init():
        # Seed the f32 accumulator with the folded bias (bih + bhh).
        acc_ref[...] = jnp.broadcast_to(b_ref[...], acc_ref.shape)

    x = jnp.maximum(x_ref[...], 0)          # relu on VPU
    h = jnp.maximum(h_ref[...], 0)
    # Two K-tile GEMMs on the MXU, both accumulating into one f32 scratch.
    acc_ref[...] += (
        jnp.dot(x, wih_ref[...], preferred_element_type=jnp.float32)
        + jnp.dot(h, whh_ref[...], preferred_element_type=jnp.float32))

    @pl.when(k == pl.num_programs(2) - 1)
    def _finalize():
        o_ref[...] = acc_ref[...].astype(o_ref.dtype)
    # TODO(synk): F.dropout(training=True) path not implemented; eval mode is identity.


def gated_recurrent_unit(inp, hidden, wih, bih, whh, bhh, *,
                         tile_m=256, tile_n=None, tile_k=None,
                         compute_dtype=None):
    """inp, hidden: [N, F]; wih/whh: [F, F] (PyTorch (out, in) layout);
    bih/bhh: [F]. Returns [N, F] = relu(inp) @ wih.T + bih + relu(hidden) @ whh.T + bhh."""
    N, F = inp.shape
    out_dtype = inp.dtype

    # Fold the two biases once in the wrapper; keep f32 for the accumulator seed.
    b = (bih.astype(jnp.float32) + bhh.astype(jnp.float32)).reshape(1, F)

    # Pre-transpose PyTorch (out, in) weights so the kernel computes x @ W^T.
    wih_t = wih.T
    whh_t = whh.T

    if compute_dtype is not None:
        inp = inp.astype(compute_dtype)
        hidden = hidden.astype(compute_dtype)
        wih_t = wih_t.astype(compute_dtype)
        whh_t = whh_t.astype(compute_dtype)

    # ---- tile selection (respect the (8, 128) layout; pad & slice back) ----
    assert tile_m % 8 == 0
    Fp = _round_up(F, 128)
    if tile_n is None:
        tile_n = 256 if (Fp % 256 == 0) else 128
    if tile_k is None:
        tile_k = 256 if (Fp % 256 == 0) else 128
    tile_n = min(tile_n, Fp)
    tile_k = min(tile_k, Fp)
    assert Fp % tile_n == 0 and Fp % tile_k == 0

    Np = _round_up(N, 8)
    if Np >= tile_m:
        Np = _round_up(N, tile_m)
    else:
        tile_m = Np

    def _pad2(a, rows, cols):
        pr, pc = rows - a.shape[0], cols - a.shape[1]
        if pr or pc:
            a = jnp.pad(a, ((0, pr), (0, pc)))
        return a

    inp_p = _pad2(inp, Np, Fp)
    hid_p = _pad2(hidden, Np, Fp)
    wih_p = _pad2(wih_t, Fp, Fp)
    whh_p = _pad2(whh_t, Fp, Fp)
    b_p = _pad2(b, 1, Fp)

    grid = (Np // tile_m, Fp // tile_n, Fp // tile_k)

    in_itemsize = jnp.dtype(inp_p.dtype).itemsize
    cost = pl.CostEstimate(
        flops=4 * Np * Fp * Fp,                    # two GEMMs, 2*N*F*F each
        transcendentals=0,
        bytes_accessed=(2 * Np * Fp + 2 * Fp * Fp) * in_itemsize
                       + Np * Fp * jnp.dtype(out_dtype).itemsize
                       + Fp * 4)

    out = pl.pallas_call(
        _gru_kernel,
        out_shape=jax.ShapeDtypeStruct((Np, Fp), out_dtype),
        grid_spec=pltpu.PrefetchScalarGridSpec(
            num_scalar_prefetch=0,
            grid=grid,
            in_specs=[
                pl.BlockSpec((tile_m, tile_k), lambda i, j, k: (i, k)),   # input
                pl.BlockSpec((tile_m, tile_k), lambda i, j, k: (i, k)),   # hidden
                pl.BlockSpec((tile_k, tile_n), lambda i, j, k: (k, j)),   # wih^T tile
                pl.BlockSpec((tile_k, tile_n), lambda i, j, k: (k, j)),   # whh^T tile
                pl.BlockSpec((1, tile_n),      lambda i, j, k: (0, j)),   # folded bias
            ],
            out_specs=pl.BlockSpec((tile_m, tile_n), lambda i, j, k: (i, j)),
            scratch_shapes=[pltpu.VMEM((tile_m, tile_n), jnp.float32)],
        ),
        compiler_params=pltpu.CompilerParams(
            dimension_semantics=("parallel", "parallel", "arbitrary")),
        cost_estimate=cost,
    )(inp_p, hid_p, wih_p, whh_p, b_p)

    return out[:N, :F]


def _reference(inp, hidden, wih, bih, whh, bhh):
    x = jnp.maximum(inp, 0.0)
    h = jnp.maximum(hidden, 0.0)
    return x @ wih.T + bih + h @ whh.T + bhh


def _make_inputs(key, n, fea):
    k1, k2, k3, k4, k5, k6 = jax.random.split(key, 6)
    bound = 1.0 / (fea ** 0.5)
    inp = jax.random.normal(k1, (n, fea), dtype=jnp.float32)
    hidden = jax.random.normal(k2, (n, fea), dtype=jnp.float32)
    wih = jax.random.uniform(k3, (fea, fea), minval=-bound, maxval=bound, dtype=jnp.float32)
    bih = jax.random.uniform(k4, (fea,),     minval=-bound, maxval=bound, dtype=jnp.float32)
    whh = jax.random.uniform(k5, (fea, fea), minval=-bound, maxval=bound, dtype=jnp.float32)
    bhh = jax.random.uniform(k6, (fea,),     minval=-bound, maxval=bound, dtype=jnp.float32)
    return inp, hidden, wih, bih, whh, bhh


if __name__ == "__main__":
    key = jax.random.PRNGKey(0)
    key_a, key_b = jax.random.split(key)

    # Small shape matching the module signature (batch=8, fea_size=128).
    args_a = _make_inputs(key_a, 8, 128)
    out_a = jax.block_until_ready(gated_recurrent_unit(*args_a))
    ref_a = _reference(*args_a)
    assert out_a.shape == (8, 128)
    assert jnp.allclose(out_a, ref_a, atol=1e-4, rtol=1e-4), "mismatch (small case)"

    # Larger, non-aligned shape to exercise the M/N/K grid + padding path.
    args_b = _make_inputs(key_b, 300, 384)
    out_b = jax.block_until_ready(gated_recurrent_unit(*args_b))
    ref_b = _reference(*args_b)
    assert out_b.shape == (300, 384)
    assert jnp.allclose(out_b, ref_b, atol=1e-4, rtol=1e-4), "mismatch (tiled case)"

    print("KERNEL_OK")
</pallas_src>

<mosaic_0001>
module attributes {stable_mosaic.version = 11 : i64} {
  func.func @_gru_kernel(%arg0: i32, %arg1: i32, %arg2: i32, %arg3: memref<8x128xf32, #tpu.memory_space<vmem>>, %arg4: memref<8x128xf32, #tpu.memory_space<vmem>>, %arg5: memref<128x128xf32, #tpu.memory_space<vmem>>, %arg6: memref<128x128xf32, #tpu.memory_space<vmem>>, %arg7: memref<1x128xf32, #tpu.memory_space<vmem>>, %arg8: memref<8x128xf32, #tpu.memory_space<vmem>>, %arg9: memref<8x128xf32, #tpu.memory_space<vmem>>) attributes {dimension_semantics = [#tpu.dimension_semantics<parallel>, #tpu.dimension_semantics<parallel>, #tpu.dimension_semantics<arbitrary>], iteration_bounds = array<i64: 1, 1, 1>, scalar_prefetch = 0 : i64, scratch_operands = 1 : i64, tpu.core_type = #tpu.core_type<tc>, window_params = [{transform_indices = @transform_0, window_bounds = array<i64: 8, 128>}, {transform_indices = @transform_1, window_bounds = array<i64: 8, 128>}, {transform_indices = @transform_2, window_bounds = array<i64: 128, 128>}, {transform_indices = @transform_3, window_bounds = array<i64: 128, 128>}, {transform_indices = @transform_4, window_bounds = array<i64: 1, 128>}, {transform_indices = @transform_5, window_bounds = array<i64: 8, 128>}]} {
    %c0_i32 = arith.constant 0 : i32
    %0 = arith.cmpi eq, %arg2, %c0_i32 : i32
    %1 = arith.extui %0 : i1 to i32
    %c0_i32_0 = arith.constant 0 : i32
    %2 = arith.cmpi ne, %1, %c0_i32_0 : i32
    scf.if %2 {
      %c0_17 = arith.constant 0 : index
      %c0_18 = arith.constant 0 : index
      %20 = vector.load %arg7[%c0_17, %c0_18] : memref<1x128xf32, #tpu.memory_space<vmem>>, vector<1x128xf32>
      %21 = vector.shape_cast %20 : vector<1x128xf32> to vector<1x128xf32>
      %22 = vector.broadcast %21 : vector<1x128xf32> to vector<8x128xf32>
      %c0_19 = arith.constant 0 : index
      %c0_20 = arith.constant 0 : index
      %23 = vector.load %arg9[%c0_19, %c0_20] : memref<8x128xf32, #tpu.memory_space<vmem>>, vector<8x128xf32>
      tpu.vector_store %arg9[%c0_19, %c0_20], %22 {strides = array<i32>} : memref<8x128xf32, #tpu.memory_space<vmem>>, vector<8x128xf32>,
    } else {
    }
    %c0 = arith.constant 0 : index
    %c0_1 = arith.constant 0 : index
    %3 = vector.load %arg3[%c0, %c0_1] : memref<8x128xf32, #tpu.memory_space<vmem>>, vector<8x128xf32>
    %cst = arith.constant 0.000000e+00 : f32
    %4 = vector.broadcast %cst : f32 to vector<8x128xf32>
    %5 = arith.maximumf %3, %4 : vector<8x128xf32>
    %c0_2 = arith.constant 0 : index
    %c0_3 = arith.constant 0 : index
    %6 = vector.load %arg4[%c0_2, %c0_3] : memref<8x128xf32, #tpu.memory_space<vmem>>, vector<8x128xf32>
    %cst_4 = arith.constant 0.000000e+00 : f32
    %7 = vector.broadcast %cst_4 : f32 to vector<8x128xf32>
    %8 = arith.maximumf %6, %7 : vector<8x128xf32>
    %c0_5 = arith.constant 0 : index
    %c0_6 = arith.constant 0 : index
    %9 = vector.load %arg9[%c0_5, %c0_6] : memref<8x128xf32, #tpu.memory_space<vmem>>, vector<8x128xf32>
    %c0_7 = arith.constant 0 : index
    %c0_8 = arith.constant 0 : index
    %10 = vector.load %arg5[%c0_7, %c0_8] : memref<128x128xf32, #tpu.memory_space<vmem>>, vector<128x128xf32>
    %cst_9 = arith.constant dense<0.000000e+00> : vector<8x128xf32>
    %11 = tpu.matmul %5, %10, %cst_9 {dimension_numbers = #tpu.dot_dimension_numbers<[1], [0], [0], [1], [0, 0, 1, 1], [], []>} : vector<8x128xf32>, vector<128x128xf32>, vector<8x128xf32> -> vector<8x128xf32>
    %c0_10 = arith.constant 0 : index
    %c0_11 = arith.constant 0 : index
    %12 = vector.load %arg6[%c0_10, %c0_11] : memref<128x128xf32, #tpu.memory_space<vmem>>, vector<128x128xf32>
    %cst_12 = arith.constant dense<0.000000e+00> : vector<8x128xf32>
    %13 = tpu.matmul %8, %12, %cst_12 {dimension_numbers = #tpu.dot_dimension_numbers<[1], [0], [0], [1], [0, 0, 1, 1], [], []>} : vector<8x128xf32>, vector<128x128xf32>, vector<8x128xf32> -> vector<8x128xf32>
    %14 = arith.addf %11, %13 : vector<8x128xf32>
    %15 = arith.addf %9, %14 : vector<8x128xf32>
    %c0_13 = arith.constant 0 : index
    %c0_14 = arith.constant 0 : index
    %16 = vector.load %arg9[%c0_13, %c0_14] : memref<8x128xf32, #tpu.memory_space<vmem>>, vector<8x128xf32>
    tpu.vector_store %arg9[%c0_13, %c0_14], %15 {strides = array<i32>} : memref<8x128xf32, #tpu.memory_space<vmem>>, vector<8x128xf32>,
    %c0_i32_15 = arith.constant 0 : i32
    %17 = arith.cmpi eq, %arg2, %c0_i32_15 : i32
    %18 = arith.extui %17 : i1 to i32
    %c0_i32_16 = arith.constant 0 : i32
    %19 = arith.cmpi ne, %18, %c0_i32_16 : i32
    scf.if %19 {
      %c0_17 = arith.constant 0 : index
      %c0_18 = arith.constant 0 : index
      %20 = vector.load %arg9[%c0_17, %c0_18] : memref<8x128xf32, #tpu.memory_space<vmem>>, vector<8x128xf32>
      %c0_19 = arith.constant 0 : index
      %c0_20 = arith.constant 0 : index
      %21 = vector.load %arg8[%c0_19, %c0_20] : memref<8x128xf32, #tpu.memory_space<vmem>>, vector<8x128xf32>
      tpu.vector_store %arg8[%c0_19, %c0_20], %20 {strides = array<i32>} : memref<8x128xf32, #tpu.memory_space<vmem>>, vector<8x128xf32>,
    } else {
    }
    return
  }
  func.func @transform_0(%arg0: i32, %arg1: i32, %arg2: i32) -> (i32, i32) {
    %c0_i32 = arith.constant 0 : i32
    return %arg0, %arg2 : i32, i32
  }
  func.func @transform_1(%arg0: i32, %arg1: i32, %arg2: i32) -> (i32, i32) {
    %c0_i32 = arith.constant 0 : i32
    return %arg0, %arg2 : i32, i32
  }
  func.func @transform_2(%arg0: i32, %arg1: i32, %arg2: i32) -> (i32, i32) {
    %c0_i32 = arith.constant 0 : i32
    return %arg2, %arg1 : i32, i32
  }
  func.func @transform_3(%arg0: i32, %arg1: i32, %arg2: i32) -> (i32, i32) {
    %c0_i32 = arith.constant 0 : i32
    return %arg2, %arg1 : i32, i32
  }
  func.func @transform_4(%arg0: i32, %arg1: i32, %arg2: i32) -> (i32, i32) {
    %c0_i32 = arith.constant 0 : i32
    %c0_i32_0 = arith.constant 0 : i32
    return %c0_i32, %arg1 : i32, i32
  }
  func.func @transform_5(%arg0: i32, %arg1: i32, %arg2: i32) -> (i32, i32) {
    %c0_i32 = arith.constant 0 : i32
    return %arg0, %arg1 : i32, i32
  }
}

</mosaic_0001>

<llo_original>
// kernel: tpu_custom_call.1
$region0: #{tpu_custom_call.1}
  #allocation0 [shape = 'u32[]', space=smem, size = 0x4, offset = 0x4, fixed_abs, tag = 'smem constant byte address 0x4 - core index']
  #allocation1 [shape = 'u32[144,128]{1,0:T(1,128)}', space=vmem, size = 0x12000, scoped, tag = 'internal scratch']
  #allocation2 [shape = 'f32[8,128]{1,0:T(8,128)}', space=vmem, size = 0x1000, scoped, tag = 'scratch operand']
  %s0 = inlined_call_operand.hbm [shape: f32[8,128], index: 0, kind: input, shape index: {}]
  %s1 = inlined_call_operand.hbm [shape: f32[8,128], index: 1, kind: input, shape index: {}]
  %s2 = inlined_call_operand.hbm [shape: f32[128,128], index: 2, kind: input, shape index: {}]
  %s3 = inlined_call_operand.hbm [shape: f32[128,128], index: 3, kind: input, shape index: {}]
  %s4 = inlined_call_operand.vmem [shape: f32[1,128], index: 4, kind: input, shape index: {}]
  %s5 = inlined_call_operand.hbm [shape: f32[8,128], index: 5, kind: output, shape index: {}]
  %s6 = sld [smem:[#allocation0]]
  $region54: #{tpu_custom_call.1} parent=0
    _
  %s8 = ssub.s32 1, %s6
  %s9 = scalar_select 0, %s8, %s6
  $region1: #{tpu_custom_call.1} parent=0
    #allocation3 [shape = 'u8[4096]{0}', space=vmem, size = 0x1000, scoped, tag = 'input window, operand 0, single buffered']
    #allocation4 [shape = 's32[1]{0}', space=sflag, size = 0x4, scoped, tag = 'scoped memory for tpu_custom_call.1']
    #allocation5 [shape = 's32[1]{0}', space=sflag, size = 0x4, scoped, tag = 'scoped memory for tpu_custom_call.1']
    #allocation6 [shape = 'u8[4096]{0}', space=vmem, size = 0x1000, scoped, tag = 'input window, operand 1, single buffered']
    #allocation7 [shape = 's32[1]{0}', space=sflag, size = 0x4, scoped, tag = 'scoped memory for tpu_custom_call.1']
    #allocation8 [shape = 'u8[65536]{0}', space=vmem, size = 0x10000, scoped, tag = 'input window, operand 2, single buffered']
    #allocation9 [shape = 'u8[65536]{0}', space=vmem, size = 0x10000, scoped, tag = 'input window, operand 3, single buffered']
    #allocation10 [shape = 's32[1]{0}', space=sflag, size = 0x4, scoped, tag = 'scoped memory for tpu_custom_call.1']
    #allocation11 [shape = 'u8[4096]{0}', space=vmem, size = 0x1000, scoped, tag = 'output window, operand 0, single buffered']
    %10 = vsyncpa [#allocation4], 0
    %11 = vsyncpa [#allocation7], 0
    %12 = vsyncpa [#allocation10], 0
    %13 = vsyncpa [#allocation5], 0
    // Predicated region
    $region2: #{tpu_custom_call.1} parent=1 // pred_check
      _
    $region3: #{tpu_custom_call.1} parent=1 // pred_check_branch
      %15 = sbr.rel (0) target = $region5
    $region4: #{tpu_custom_call.1} parent=1 // pred_region
      %s17 = ssub.s32 128, 128
      %18 = vsyncadd [#allocation4], %s17
      %s20 = sshll.u32 [#allocation3], 4
      %s21 = int_to_ptr.vmem [resolvable:$true] %s20
      %23 = dma.hbm_to_vmem [thread:$0]  %s0, 128, %s21, [#allocation4]
    $region5: #{tpu_custom_call.1} parent=1 // pred_fallthru
      _
    // Predicated region
    $region6: #{tpu_custom_call.1} parent=1 // pred_check
      _
    $region7: #{tpu_custom_call.1} parent=1 // pred_check_branch
      %25 = sbr.rel (0) target = $region9
    $region8: #{tpu_custom_call.1} parent=1 // pred_region
      %s27 = ssub.s32 128, 128
      %28 = vsyncadd [#allocation7], %s27
      %s30 = sshll.u32 [#allocation6], 4
      %s31 = int_to_ptr.vmem [resolvable:$true] %s30
      %33 = dma.hbm_to_vmem [thread:$0]  %s1, 128, %s31, [#allocation7]
    $region9: #{tpu_custom_call.1} parent=1 // pred_fallthru
      _
    // Predicated region
    $region10: #{tpu_custom_call.1} parent=1 // pred_check
      _
    $region11: #{tpu_custom_call.1} parent=1 // pred_check_branch
      %35 = sbr.rel (0) target = $region13
    $region12: #{tpu_custom_call.1} parent=1 // pred_region
      %s37 = ssub.s32 2048, 2048
      %38 = vsyncadd [#allocation7], %s37
      %s39 = sshll.u32 [#allocation8], 4
      %s40 = int_to_ptr.vmem [resolvable:$true] %s39
      %45 = dma.hbm_to_vmem [thread:$0]  %s2, 2048, %s40, [#allocation7], 128, 128, 8
    $region13: #{tpu_custom_call.1} parent=1 // pred_fallthru
      _
    // Predicated region
    $region14: #{tpu_custom_call.1} parent=1 // pred_check
      _
    $region15: #{tpu_custom_call.1} parent=1 // pred_check_branch
      %47 = sbr.rel (0) target = $region17
    $region16: #{tpu_custom_call.1} parent=1 // pred_region
      %s49 = ssub.s32 2048, 2048
      %50 = vsyncadd [#allocation10], %s49
      %s51 = sshll.u32 [#allocation9], 4
      %s52 = int_to_ptr.vmem [resolvable:$true] %s51
      %57 = dma.hbm_to_vmem [thread:$0]  %s3, 2048, %s52, [#allocation10], 128, 128, 8
    $region17: #{tpu_custom_call.1} parent=1 // pred_fallthru
      _
    // Predicated region
    $region18: #{tpu_custom_call.1} parent=1 // pred_check
      _
    $region19: #{tpu_custom_call.1} parent=1 // pred_check_branch
      %59 = sbr.rel (0) target = $region21
    $region20: #{tpu_custom_call.1} parent=1 // pred_region
      _
    $region21: #{tpu_custom_call.1} parent=1 // pred_fallthru
      _
    // Predicated region
    $region22: #{tpu_custom_call.1} parent=1 // pred_check
      _
    $region23: #{tpu_custom_call.1} parent=1 // pred_check_branch
      %61 = sbr.rel (0) target = $region25
    $region24: #{tpu_custom_call.1} parent=1 // pred_region
      %62 = dma.done [#allocation4], 128
    $region25: #{tpu_custom_call.1} parent=1 // pred_fallthru
      _
    // Predicated region
    $region26: #{tpu_custom_call.1} parent=1 // pred_check
      _
    $region27: #{tpu_custom_call.1} parent=1 // pred_check_branch
      %64 = sbr.rel (0) target = $region29
    $region28: #{tpu_custom_call.1} parent=1 // pred_region
      %65 = dma.done [#allocation7], 128
    $region29: #{tpu_custom_call.1} parent=1 // pred_fallthru
      _
    // Predicated region
    $region30: #{tpu_custom_call.1} parent=1 // pred_check
      _
    $region31: #{tpu_custom_call.1} parent=1 // pred_check_branch
      %67 = sbr.rel (0) target = $region33
    $region32: #{tpu_custom_call.1} parent=1 // pred_region
      %68 = dma.done [#allocation7], 2048
    $region33: #{tpu_custom_call.1} parent=1 // pred_fallthru
      _
    // Predicated region
    $region34: #{tpu_custom_call.1} parent=1 // pred_check
      _
    $region35: #{tpu_custom_call.1} parent=1 // pred_check_branch
      %70 = sbr.rel (0) target = $region37
    $region36: #{tpu_custom_call.1} parent=1 // pred_region
      %71 = dma.done [#allocation10], 2048
    $region37: #{tpu_custom_call.1} parent=1 // pred_fallthru
      _
    %p72 = scmp.eq.s32.totalorder 0, 0
    // Predicated region
    $region38: #{tpu_custom_call.1} parent=1 // pred_check
      %p73 = pneg %p72
    $region39: #{tpu_custom_call.1} parent=1 // pred_check_branch
      %75 = sbr.rel (%p73) target = $region41
    $region40: #{tpu_custom_call.1} parent=1 // pred_region
      %v76 = vld [vmem:[%s4] sm:$0x1]
      %v78 = vlaneseq
      %v79 = vshrl.u32 %v78, 7
      %v80 = vsub.s32 0, %v79
      %v81 = vrot.slane %v76, %v80
      %83 = vst [vmem:[#allocation2] sm:$0xff] %v81
    $region41: #{tpu_custom_call.1} parent=1 // pred_fallthru
      _
    %v84 = vld [vmem:[#allocation3] sm:$0xff]
    %v85 = vmax.f32 %v84, 0.0
    %v86 = vld [vmem:[#allocation6] sm:$0xff]
    %v87 = vmax.f32 %v86, 0.0
    %v88 = vld [vmem:[#allocation2] sm:$0xff]
    %v89 = vld [vmem:[#allocation8] sm:$0xff]
    %v90 = vld [vmem:[#allocation8 + $0x8] sm:$0xff]
    %v91 = vld [vmem:[#allocation8 + $0x10] sm:$0xff]
    %v92 = vld [vmem:[#allocation8 + $0x18] sm:$0xff]
    %v93 = vld [vmem:[#allocation8 + $0x20] sm:$0xff]
    %v94 = vld [vmem:[#allocation8 + $0x28] sm:$0xff]
    %v95 = vld [vmem:[#allocation8 + $0x30] sm:$0xff]
    %v96 = vld [vmem:[#allocation8 + $0x38] sm:$0xff]
    %v97 = vld [vmem:[#allocation8 + $0x40] sm:$0xff]
    %v98 = vld [vmem:[#allocation8 + $0x48] sm:$0xff]
    %v99 = vld [vmem:[#allocation8 + $0x50] sm:$0xff]
    %v100 = vld [vmem:[#allocation8 + $0x58] sm:$0xff]
    %v101 = vld [vmem:[#allocation8 + $0x60] sm:$0xff]
    %v102 = vld [vmem:[#allocation8 + $0x68] sm:$0xff]
    %v103 = vld [vmem:[#allocation8 + $0x70] sm:$0xff]
    %v104 = vld [vmem:[#allocation8 + $0x78] sm:$0xff]
    %v105 = vld [vmem:[#allocation9] sm:$0xff]
    %v106 = vld [vmem:[#allocation9 + $0x8] sm:$0xff]
    %v107 = vld [vmem:[#allocation9 + $0x10] sm:$0xff]
    %v108 = vld [vmem:[#allocation9 + $0x18] sm:$0xff]
    %v109 = vld [vmem:[#allocation9 + $0x20] sm:$0xff]
    %v110 = vld [vmem:[#allocation9 + $0x28] sm:$0xff]
    %v111 = vld [vmem:[#allocation9 + $0x30] sm:$0xff]
    %v112 = vld [vmem:[#allocation9 + $0x38] sm:$0xff]
    %v113 = vld [vmem:[#allocation9 + $0x40] sm:$0xff]
    %v114 = vld [vmem:[#allocation9 + $0x48] sm:$0xff]
    %v115 = vld [vmem:[#allocation9 + $0x50] sm:$0xff]
    %v116 = vld [vmem:[#allocation9 + $0x58] sm:$0xff]
    %v117 = vld [vmem:[#allocation9 + $0x60] sm:$0xff]
    %v118 = vld [vmem:[#allocation9 + $0x68] sm:$0xff]
    %v119 = vld [vmem:[#allocation9 + $0x70] sm:$0xff]
    %v120 = vld [vmem:[#allocation9 + $0x78] sm:$0xff]
    %121 = vmatprep.subr.mxu0 0.0
    %122 = vmatpush1.msra.mxu0 %v120
    %123 = vmatprep.subr.mxu0 0.0
    %124 = vmatpush1.msra.mxu0 %v119
    %125 = vmatprep.subr.mxu0 0.0
    %126 = vmatpush1.msra.mxu0 %v118
    %127 = vmatprep.subr.mxu0 0.0
    %128 = vmatpush1.msra.mxu0 %v117
    %129 = vmatprep.subr.mxu0 0.0
    %130 = vmatpush1.msra.mxu0 %v116
    %131 = vmatprep.subr.mxu0 0.0
    %132 = vmatpush1.msra.mxu0 %v115
    %133 = vmatprep.subr.mxu0 0.0
    %134 = vmatpush1.msra.mxu0 %v114
    %135 = vmatprep.subr.mxu0 0.0
    %136 = vmatpush1.msra.mxu0 %v113
    %137 = vmatprep.subr.mxu0 0.0
    %138 = vmatpush1.msra.mxu0 %v112
    %139 = vmatprep.subr.mxu0 0.0
    %140 = vmatpush1.msra.mxu0 %v111
    %141 = vmatprep.subr.mxu0 0.0
    %142 = vmatpush1.msra.mxu0 %v110
    %143 = vmatprep.subr.mxu0 0.0
    %144 = vmatpush1.msra.mxu0 %v109
    %145 = vmatprep.subr.mxu0 0.0
    %146 = vmatpush1.msra.mxu0 %v108
    %147 = vmatprep.subr.mxu0 0.0
    %148 = vmatpush1.msra.mxu0 %v107
    %149 = vmatprep.subr.mxu0 0.0
    %150 = vmatpush1.msra.mxu0 %v106
    %151 = vmatprep.subr.mxu0 0.0
    %152 = vmatpush1.msra.mxu0 %v105
    %153 = vmatprep.subr.mxu0 0.0
    %154 = vmatpush2.msra.mxu0 0.0
    %155 = vmatprep.subr.mxu0 0.0
    %156 = vmatpush2.msra.mxu0 0.0
    %157 = vmatprep.subr.mxu0 0.0
    %158 = vmatpush2.msra.mxu0 0.0
    %159 = vmatprep.subr.mxu0 0.0
    %160 = vmatpush2.msra.mxu0 0.0
    %161 = vmatprep.subr.mxu0 0.0
    %162 = vmatpush2.msra.mxu0 0.0
    %163 = vmatprep.subr.mxu0 0.0
    %164 = vmatpush2.msra.mxu0 0.0
    %165 = vmatprep.subr.mxu0 0.0
    %166 = vmatpush2.msra.mxu0 0.0
    %167 = vmatprep.subr.mxu0 0.0
    %168 = vmatpush2.msra.mxu0 0.0
    %169 = vmatprep.subr.mxu0 0.0
    %170 = vmatpush2.msra.mxu0 0.0
    %171 = vmatprep.subr.mxu0 0.0
    %172 = vmatpush2.msra.mxu0 0.0
    %173 = vmatprep.subr.mxu0 0.0
    %174 = vmatpush2.msra.mxu0 0.0
    %175 = vmatprep.subr.mxu0 0.0
    %176 = vmatpush2.msra.mxu0 0.0
    %177 = vmatprep.subr.mxu0 0.0
    %178 = vmatpush2.msra.mxu0 0.0
    %179 = vmatprep.subr.mxu0 0.0
    %180 = vmatpush2.msra.mxu0 0.0
    %181 = vmatprep.subr.mxu0 0.0
    %182 = vmatpush2.msra.mxu0 0.0
    %183 = vmatprep.subr.mxu0 0.0
    %184 = vmatpush2.msra.mxu0 0.0
    %185 = vmatprep.mubr.f32.mxu0 0.0
    %186 = vmatmul.mubr.f32.gmra.mxu0 %v87
    %v187 = vpop.f32.mrf.mxu0
    %v188 = vadd.f32 0.0, %v187
    %v189 = vpop.f32.mrf.mxu0
    %190 = vdwg.mxu0
    %191 = vmatprep.subr.mxu0 0.0
    %192 = vmatpush1.msra.mxu0 %v104
    %193 = vmatprep.subr.mxu0 0.0
    %194 = vmatpush1.msra.mxu0 %v103
    %195 = vmatprep.subr.mxu0 0.0
    %196 = vmatpush1.msra.mxu0 %v102
    %197 = vmatprep.subr.mxu0 0.0
    %198 = vmatpush1.msra.mxu0 %v101
    %199 = vmatprep.subr.mxu0 0.0
    %200 = vmatpush1.msra.mxu0 %v100
    %201 = vmatprep.subr.mxu0 0.0
    %202 = vmatpush1.msra.mxu0 %v99
    %203 = vmatprep.subr.mxu0 0.0
    %204 = vmatpush1.msra.mxu0 %v98
    %205 = vmatprep.subr.mxu0 0.0
    %206 = vmatpush1.msra.mxu0 %v97
    %207 = vmatprep.subr.mxu0 0.0
    %208 = vmatpush1.msra.mxu0 %v96
    %209 = vmatprep.subr.mxu0 0.0
    %210 = vmatpush1.msra.mxu0 %v95
    %211 = vmatprep.subr.mxu0 0.0
    %212 = vmatpush1.msra.mxu0 %v94
    %213 = vmatprep.subr.mxu0 0.0
    %214 = vmatpush1.msra.mxu0 %v93
    %215 = vmatprep.subr.mxu0 0.0
    %216 = vmatpush1.msra.mxu0 %v92
    %217 = vmatprep.subr.mxu0 0.0
    %218 = vmatpush1.msra.mxu0 %v91
    %219 = vmatprep.subr.mxu0 0.0
    %220 = vmatpush1.msra.mxu0 %v90
    %221 = vmatprep.subr.mxu0 0.0
    %222 = vmatpush1.msra.mxu0 %v89
    %223 = vmatprep.subr.mxu0 0.0
    %224 = vmatpush2.msra.mxu0 0.0
    %225 = vmatprep.subr.mxu0 0.0
    %226 = vmatpush2.msra.mxu0 0.0
    %227 = vmatprep.subr.mxu0 0.0
    %228 = vmatpush2.msra.mxu0 0.0
    %229 = vmatprep.subr.mxu0 0.0
    %230 = vmatpush2.msra.mxu0 0.0
    %231 = vmatprep.subr.mxu0 0.0
    %232 = vmatpush2.msra.mxu0 0.0
    %233 = vmatprep.subr.mxu0 0.0
    %234 = vmatpush2.msra.mxu0 0.0
    %235 = vmatprep.subr.mxu0 0.0
    %236 = vmatpush2.msra.mxu0 0.0
    %237 = vmatprep.subr.mxu0 0.0
    %238 = vmatpush2.msra.mxu0 0.0
    %239 = vmatprep.subr.mxu0 0.0
    %240 = vmatpush2.msra.mxu0 0.0
    %241 = vmatprep.subr.mxu0 0.0
    %242 = vmatpush2.msra.mxu0 0.0
    %243 = vmatprep.subr.mxu0 0.0
    %244 = vmatpush2.msra.mxu0 0.0
    %245 = vmatprep.subr.mxu0 0.0
    %246 = vmatpush2.msra.mxu0 0.0
    %247 = vmatprep.subr.mxu0 0.0
    %248 = vmatpush2.msra.mxu0 0.0
    %249 = vmatprep.subr.mxu0 0.0
    %250 = vmatpush2.msra.mxu0 0.0
    %251 = vmatprep.subr.mxu0 0.0
    %252 = vmatpush2.msra.mxu0 0.0
    %253 = vmatprep.subr.mxu0 0.0
    %254 = vmatpush2.msra.mxu0 0.0
    %255 = vmatprep.mubr.f32.mxu0 0.0
    %256 = vmatmul.mubr.f32.gmra.mxu0 %v85
    %v257 = vpop.f32.mrf.mxu0
    %v258 = vadd.f32 %v188, %v257
    %v259 = vpop.f32.mrf.mxu0
    %260 = vdwg.mxu0
    %v261 = vadd.f32 %v88, %v258
    %262 = vst [vmem:[#allocation2] sm:$0xff] %v261
    // Predicated region
    $region42: #{tpu_custom_call.1} parent=1 // pred_check
      %p263 = pneg %p72
    $region43: #{tpu_custom_call.1} parent=1 // pred_check_branch
      %265 = sbr.rel (%p263) target = $region45
    $region44: #{tpu_custom_call.1} parent=1 // pred_region
      %v266 = vld [vmem:[#allocation2] sm:$0xff]
      %267 = vst [vmem:[#allocation11] sm:$0xff] %v266
    $region45: #{tpu_custom_call.1} parent=1 // pred_fallthru
      _
    // Predicated region
    $region46: #{tpu_custom_call.1} parent=1 // pred_check
      _
    $region47: #{tpu_custom_call.1} parent=1 // pred_check_branch
      %269 = sbr.rel (0) target = $region49
    $region48: #{tpu_custom_call.1} parent=1 // pred_region
      %s271 = ssub.s32 128, 128
      %272 = vsyncadd [#allocation5], %s271
      %s274 = sshll.u32 [#allocation11], 4
      %s275 = int_to_ptr.vmem [resolvable:$true] %s274
      %277 = dma.vmem_to_hbm [thread:$0]  %s275, 128, %s5, [#allocation5]
    $region49: #{tpu_custom_call.1} parent=1 // pred_fallthru
      _
    // Predicated region
    $region50: #{tpu_custom_call.1} parent=1 // pred_check
      _
    $region51: #{tpu_custom_call.1} parent=1 // pred_check_branch
      %279 = sbr.rel (0) target = $region53
    $region52: #{tpu_custom_call.1} parent=1 // pred_region
      %280 = dma.done [#allocation5], 128
    $region53: #{tpu_custom_call.1} parent=1 // pred_fallthru
      _
    %281 = vsyncpa [#allocation4], 1
    %282 = vsyncpa [#allocation7], 1
    %283 = vsyncpa [#allocation10], 1
    %284 = vsyncpa [#allocation5], 1

</llo_original>
